<compile_context>
chip_gen: v7x
topology: tpu7x:2x2x1
jax: 0.10.0
libtpu: 0.0.40
codegen_flags: <defaults>
</compile_context>

<pallas_src>
import jax
import jax.numpy as jnp
from jax.experimental import pallas as pl
from jax.experimental.pallas import tpu as pltpu


def _gcn2_fused_kernel(a_ref, x_ref, w1_ref, s1_ref, t1_ref, w2_ref, b2_ref, o_ref):
    """Fused 2-layer GCN forward on fully-resident VMEM tiles.

    out = A @ relu( (A @ (X @ W1)) * scale1 + shift1 ) @ W2p + b2p
    where scale1/shift1 already fold the GraphConv bias + eval-mode BatchNorm.
    """
    xw1 = jnp.dot(x_ref[...], w1_ref[...], preferred_element_type=jnp.float32)
    h = jnp.dot(a_ref[...], xw1, preferred_element_type=jnp.float32)
    h = jnp.maximum(h * s1_ref[...] + t1_ref[...], 0.0)          # bias+BN+ReLU fused
    # TODO(synk): F.dropout(p=0.5) only acts in training mode; eval mode is identity.
    hw2 = jnp.dot(h, w2_ref[...], preferred_element_type=jnp.float32)
    out = jnp.dot(a_ref[...], hw2, preferred_element_type=jnp.float32) + b2_ref[...]
    o_ref[...] = out.astype(o_ref.dtype)


def gcn_forward(a_norm, x, params):
    """Full GCN forward (num_layers=2, eval mode) in one pallas_call."""
    (w1, b1, gamma1, beta1, rmean1, rvar1), (w2, b2) = params
    eps = 1e-5

    n = a_norm.shape[0]
    fin = x.shape[1]
    hid = w1.shape[1]
    fout = w2.shape[1]

    # Fold GraphConv bias into the eval-mode BN affine:
    #   BN(h + b1) = (h + b1 - mean) * scale + beta = h*scale + ((b1 - mean)*scale + beta)
    scale1 = gamma1 / jnp.sqrt(rvar1 + eps)
    shift1 = (b1 - rmean1) * scale1 + beta1

    # Lane-dense output: zero-pad the output feature dim to a multiple of 128 so the
    # final store is a full-lane (unmasked) vector store; slice back in the wrapper.
    fout_pad = max(128, ((fout + 127) // 128) * 128)
    w2p = jnp.zeros((hid, fout_pad), jnp.float32).at[:, :fout].set(w2)
    b2p = jnp.zeros((1, fout_pad), jnp.float32).at[:, :fout].set(b2)

    out_pad = pl.pallas_call(
        _gcn2_fused_kernel,
        out_shape=jax.ShapeDtypeStruct((n, fout_pad), jnp.float32),
        grid_spec=pl.GridSpec(
            grid=(1,),
            in_specs=[
                pl.BlockSpec((n, n), lambda i: (0, 0)),          # A_norm (dst x src)
                pl.BlockSpec((n, fin), lambda i: (0, 0)),        # X
                pl.BlockSpec((fin, hid), lambda i: (0, 0)),      # W1
                pl.BlockSpec((1, hid), lambda i: (0, 0)),        # fused BN scale
                pl.BlockSpec((1, hid), lambda i: (0, 0)),        # fused BN shift (+b1)
                pl.BlockSpec((hid, fout_pad), lambda i: (0, 0)), # W2 (lane-padded)
                pl.BlockSpec((1, fout_pad), lambda i: (0, 0)),   # b2 (lane-padded)
            ],
            out_specs=pl.BlockSpec((n, fout_pad), lambda i: (0, 0)),
        ),
        compiler_params=pltpu.CompilerParams(
            dimension_semantics=("arbitrary",)),
    )(a_norm, x, w1, scale1[None, :], shift1[None, :], w2p, b2p)

    return out_pad[:, :fout]


def _glorot(key, shape):
    fan_in, fan_out = shape
    limit = jnp.sqrt(6.0 / (fan_in + fan_out))
    return jax.random.uniform(key, shape, jnp.float32, -limit, limit)


def _ref_forward(a_norm, x, params):
    (w1, b1, gamma1, beta1, rmean1, rvar1), (w2, b2) = params
    eps = 1e-5
    scale1 = gamma1 / jnp.sqrt(rvar1 + eps)
    shift1 = beta1 - rmean1 * scale1
    hp = jax.lax.Precision.HIGHEST
    h = jnp.dot(a_norm, jnp.dot(x, w1, precision=hp), precision=hp) + b1[None, :]
    h = jnp.maximum(h * scale1[None, :] + shift1[None, :], 0.0)
    return jnp.dot(a_norm, jnp.dot(h, w2, precision=hp), precision=hp) + b2[None, :]


if __name__ == "__main__":
    N = 128              # nodes
    IN_C, HID_C, OUT_C = 32, 64, 16

    key = jax.random.PRNGKey(0)
    k_adj, k_x, k_w1, k_w2, k_g, k_b, k_b1, k_m, k_v = jax.random.split(key, 9)

    # Deterministic random graph (dense adjacency, dst x src) + self-loops so that
    # every node has nonzero in/out degree (allow_zero_in_degree=False).
    adj = jax.random.bernoulli(k_adj, p=0.1, shape=(N, N)).astype(jnp.float32)
    adj = jnp.maximum(adj, jnp.eye(N, dtype=jnp.float32))

    deg_in = adj.sum(axis=1)   # in-degree of each dst
    deg_out = adj.sum(axis=0)  # out-degree of each src
    a_norm = adj * jax.lax.rsqrt(deg_in)[:, None] * jax.lax.rsqrt(deg_out)[None, :]

    # Node features.
    x = jax.random.normal(k_x, (N, IN_C), jnp.float32)

    # Deterministic parameter init (shapes from GCN.__init__: 2 GraphConvs + 1 BN).
    # Non-trivial bias / running stats so the bias->BN fold is actually exercised.
    w1 = _glorot(k_w1, (IN_C, HID_C))
    b1 = 0.05 * jax.random.normal(k_b1, (HID_C,), jnp.float32)
    gamma1 = 1.0 + 0.1 * jax.random.normal(k_g, (HID_C,), jnp.float32)
    beta1 = 0.1 * jax.random.normal(k_b, (HID_C,), jnp.float32)
    rmean1 = 0.05 * jax.random.normal(k_m, (HID_C,), jnp.float32)
    rvar1 = 1.0 + 0.1 * jax.random.uniform(k_v, (HID_C,), jnp.float32)
    w2 = _glorot(k_w2, (HID_C, OUT_C))
    b2 = jnp.zeros((OUT_C,), jnp.float32)

    params = ((w1, b1, gamma1, beta1, rmean1, rvar1), (w2, b2))

    out = gcn_forward(a_norm, x, params)
    out = jax.block_until_ready(out)

    ref = _ref_forward(a_norm, x, params)
    assert out.shape == (N, OUT_C)
    assert jnp.allclose(out, ref, atol=1e-3, rtol=1e-3), "mismatch vs pure-JAX reference"

    print("KERNEL_OK")
</pallas_src>

<mosaic_0001>
module attributes {stable_mosaic.version = 11 : i64} {
  func.func @_gcn2_fused_kernel(%arg0: i32, %arg1: memref<128x128xf32, #tpu.memory_space<vmem>>, %arg2: memref<128x32xf32, #tpu.memory_space<vmem>>, %arg3: memref<32x64xf32, #tpu.memory_space<vmem>>, %arg4: memref<1x64xf32, #tpu.memory_space<vmem>>, %arg5: memref<1x64xf32, #tpu.memory_space<vmem>>, %arg6: memref<64x128xf32, #tpu.memory_space<vmem>>, %arg7: memref<1x128xf32, #tpu.memory_space<vmem>>, %arg8: memref<128x128xf32, #tpu.memory_space<vmem>>) attributes {dimension_semantics = [#tpu.dimension_semantics<arbitrary>], iteration_bounds = array<i64: 1>, scalar_prefetch = 0 : i64, scratch_operands = 0 : i64, tpu.core_type = #tpu.core_type<tc>, window_params = [{pipeline_mode = #tpu.pipeline_mode<synchronous>, transform_indices = @transform_0, window_bounds = array<i64: 128, 128>}, {pipeline_mode = #tpu.pipeline_mode<synchronous>, transform_indices = @transform_1, window_bounds = array<i64: 128, 32>}, {pipeline_mode = #tpu.pipeline_mode<synchronous>, transform_indices = @transform_2, window_bounds = array<i64: 32, 64>}, {pipeline_mode = #tpu.pipeline_mode<synchronous>, transform_indices = @transform_3, window_bounds = array<i64: 1, 64>}, {pipeline_mode = #tpu.pipeline_mode<synchronous>, transform_indices = @transform_4, window_bounds = array<i64: 1, 64>}, {pipeline_mode = #tpu.pipeline_mode<synchronous>, transform_indices = @transform_5, window_bounds = array<i64: 64, 128>}, {pipeline_mode = #tpu.pipeline_mode<synchronous>, transform_indices = @transform_6, window_bounds = array<i64: 1, 128>}, {pipeline_mode = #tpu.pipeline_mode<synchronous>, transform_indices = @transform_7, window_bounds = array<i64: 128, 128>}]} {
    %c0 = arith.constant 0 : index
    %c0_0 = arith.constant 0 : index
    %0 = vector.load %arg2[%c0, %c0_0] : memref<128x32xf32, #tpu.memory_space<vmem>>, vector<128x32xf32>
    %c0_1 = arith.constant 0 : index
    %c0_2 = arith.constant 0 : index
    %1 = vector.load %arg3[%c0_1, %c0_2] : memref<32x64xf32, #tpu.memory_space<vmem>>, vector<32x64xf32>
    %cst = arith.constant dense<0.000000e+00> : vector<128x64xf32>
    %2 = tpu.matmul %0, %1, %cst {dimension_numbers = #tpu.dot_dimension_numbers<[1], [0], [0], [1], [0, 0, 1, 1], [], []>} : vector<128x32xf32>, vector<32x64xf32>, vector<128x64xf32> -> vector<128x64xf32>
    %c0_3 = arith.constant 0 : index
    %c0_4 = arith.constant 0 : index
    %3 = vector.load %arg1[%c0_3, %c0_4] : memref<128x128xf32, #tpu.memory_space<vmem>>, vector<128x128xf32>
    %cst_5 = arith.constant dense<0.000000e+00> : vector<128x64xf32>
    %4 = tpu.matmul %3, %2, %cst_5 {dimension_numbers = #tpu.dot_dimension_numbers<[1], [0], [0], [1], [0, 0, 1, 1], [], []>} : vector<128x128xf32>, vector<128x64xf32>, vector<128x64xf32> -> vector<128x64xf32>
    %c0_6 = arith.constant 0 : index
    %c0_7 = arith.constant 0 : index
    %5 = vector.load %arg4[%c0_6, %c0_7] : memref<1x64xf32, #tpu.memory_space<vmem>>, vector<1x64xf32>
    %6 = vector.broadcast %5 : vector<1x64xf32> to vector<128x64xf32>
    %7 = arith.mulf %4, %6 : vector<128x64xf32>
    %c0_8 = arith.constant 0 : index
    %c0_9 = arith.constant 0 : index
    %8 = vector.load %arg5[%c0_8, %c0_9] : memref<1x64xf32, #tpu.memory_space<vmem>>, vector<1x64xf32>
    %9 = vector.broadcast %8 : vector<1x64xf32> to vector<128x64xf32>
    %10 = arith.addf %7, %9 : vector<128x64xf32>
    %cst_10 = arith.constant 0.000000e+00 : f32
    %11 = vector.broadcast %cst_10 : f32 to vector<128x64xf32>
    %12 = arith.maximumf %10, %11 : vector<128x64xf32>
    %c0_11 = arith.constant 0 : index
    %c0_12 = arith.constant 0 : index
    %13 = vector.load %arg6[%c0_11, %c0_12] : memref<64x128xf32, #tpu.memory_space<vmem>>, vector<64x128xf32>
    %cst_13 = arith.constant dense<0.000000e+00> : vector<128x128xf32>
    %14 = tpu.matmul %12, %13, %cst_13 {dimension_numbers = #tpu.dot_dimension_numbers<[1], [0], [0], [1], [0, 0, 1, 1], [], []>} : vector<128x64xf32>, vector<64x128xf32>, vector<128x128xf32> -> vector<128x128xf32>
    %c0_14 = arith.constant 0 : index
    %c0_15 = arith.constant 0 : index
    %15 = vector.load %arg1[%c0_14, %c0_15] : memref<128x128xf32, #tpu.memory_space<vmem>>, vector<128x128xf32>
    %cst_16 = arith.constant dense<0.000000e+00> : vector<128x128xf32>
    %16 = tpu.matmul %15, %14, %cst_16 {dimension_numbers = #tpu.dot_dimension_numbers<[1], [0], [0], [1], [0, 0, 1, 1], [], []>} : vector<128x128xf32>, vector<128x128xf32>, vector<128x128xf32> -> vector<128x128xf32>
    %c0_17 = arith.constant 0 : index
    %c0_18 = arith.constant 0 : index
    %17 = vector.load %arg7[%c0_17, %c0_18] : memref<1x128xf32, #tpu.memory_space<vmem>>, vector<1x128xf32>
    %18 = vector.broadcast %17 : vector<1x128xf32> to vector<128x128xf32>
    %19 = arith.addf %16, %18 : vector<128x128xf32>
    %c0_19 = arith.constant 0 : index
    %c0_20 = arith.constant 0 : index
    %20 = vector.load %arg8[%c0_19, %c0_20] : memref<128x128xf32, #tpu.memory_space<vmem>>, vector<128x128xf32>
    tpu.vector_store %arg8[%c0_19, %c0_20], %19 {strides = array<i32>} : memref<128x128xf32, #tpu.memory_space<vmem>>, vector<128x128xf32>,
    return
  }
  func.func @transform_0(%arg0: i32) -> (i32, i32) {
    %c0_i32 = arith.constant 0 : i32
    %c0_i32_0 = arith.constant 0 : i32
    %c0_i32_1 = arith.constant 0 : i32
    return %c0_i32, %c0_i32_0 : i32, i32
  }
  func.func @transform_1(%arg0: i32) -> (i32, i32) {
    %c0_i32 = arith.constant 0 : i32
    %c0_i32_0 = arith.constant 0 : i32
    %c0_i32_1 = arith.constant 0 : i32
    return %c0_i32, %c0_i32_0 : i32, i32
  }
  func.func @transform_2(%arg0: i32) -> (i32, i32) {
    %c0_i32 = arith.constant 0 : i32
    %c0_i32_0 = arith.constant 0 : i32
    %c0_i32_1 = arith.constant 0 : i32
    return %c0_i32, %c0_i32_0 : i32, i32
  }
  func.func @transform_3(%arg0: i32) -> (i32, i32) {
    %c0_i32 = arith.constant 0 : i32
    %c0_i32_0 = arith.constant 0 : i32
    %c0_i32_1 = arith.constant 0 : i32
    return %c0_i32, %c0_i32_0 : i32, i32
  }
  func.func @transform_4(%arg0: i32) -> (i32, i32) {
    %c0_i32 = arith.constant 0 : i32
    %c0_i32_0 = arith.constant 0 : i32
    %c0_i32_1 = arith.constant 0 : i32
    return %c0_i32, %c0_i32_0 : i32, i32
  }
  func.func @transform_5(%arg0: i32) -> (i32, i32) {
    %c0_i32 = arith.constant 0 : i32
    %c0_i32_0 = arith.constant 0 : i32
    %c0_i32_1 = arith.constant 0 : i32
    return %c0_i32, %c0_i32_0 : i32, i32
  }
  func.func @transform_6(%arg0: i32) -> (i32, i32) {
    %c0_i32 = arith.constant 0 : i32
    %c0_i32_0 = arith.constant 0 : i32
    %c0_i32_1 = arith.constant 0 : i32
    return %c0_i32, %c0_i32_0 : i32, i32
  }
  func.func @transform_7(%arg0: i32) -> (i32, i32) {
    %c0_i32 = arith.constant 0 : i32
    %c0_i32_0 = arith.constant 0 : i32
    %c0_i32_1 = arith.constant 0 : i32
    return %c0_i32, %c0_i32_0 : i32, i32
  }
}

</mosaic_0001>

<llo_original>
// kernel: tpu_custom_call.1
$region0: #{tpu_custom_call.1}
  #allocation0 [shape = 'u32[]', space=smem, size = 0x4, offset = 0x4, fixed_abs, tag = 'smem constant byte address 0x4 - core index']
  #allocation1 [shape = 'u32[144,128]{1,0:T(1,128)}', space=vmem, size = 0x12000, scoped, tag = 'internal scratch']
  %s0 = inlined_call_operand.vmem [shape: f32[128,128], index: 0, kind: input, shape index: {}]
  %s1 = inlined_call_operand.vmem [shape: f32[128,32], index: 1, kind: input, shape index: {}]
  %s2 = inlined_call_operand.vmem [shape: f32[32,64], index: 2, kind: input, shape index: {}]
  %s3 = inlined_call_operand.vmem [shape: f32[1,64], index: 3, kind: input, shape index: {}]
  %s4 = inlined_call_operand.vmem [shape: f32[1,64], index: 4, kind: input, shape index: {}]
  %s5 = inlined_call_operand.hbm [shape: f32[64,128], index: 5, kind: input, shape index: {}]
  %s6 = inlined_call_operand.vmem [shape: f32[1,128], index: 6, kind: input, shape index: {}]
  %s7 = inlined_call_operand.hbm [shape: f32[128,128], index: 7, kind: output, shape index: {}]
  %s8 = sld [smem:[#allocation0]]
  $region42: #{tpu_custom_call.1} parent=0
    _
  %s10 = ssub.s32 1, %s8
  %s11 = scalar_select 0, %s10, %s8
  $region1: #{tpu_custom_call.1} parent=0
    #allocation2 [shape = 'u8[32768]{0}', space=vmem, size = 0x8000, scoped, tag = 'input window, operand 5, single buffered']
    #allocation3 [shape = 's32[1]{0}', space=sflag, size = 0x4, scoped, tag = 'scoped memory for tpu_custom_call.1']
    #allocation4 [shape = 's32[1]{0}', space=sflag, size = 0x4, scoped, tag = 'scoped memory for tpu_custom_call.1']
    #allocation5 [shape = 'u8[65536]{0}', space=vmem, size = 0x10000, scoped, tag = 'output window, operand 0, single buffered']
    %12 = vsyncpa [#allocation3], 0
    %13 = vsyncpa [#allocation4], 0
    // Predicated region
    $region2: #{tpu_custom_call.1} parent=1 // pred_check
      _
    $region3: #{tpu_custom_call.1} parent=1 // pred_check_branch
      %15 = sbr.rel (0) target = $region5
    $region4: #{tpu_custom_call.1} parent=1 // pred_region
      _
    $region5: #{tpu_custom_call.1} parent=1 // pred_fallthru
      _
    // Predicated region
    $region6: #{tpu_custom_call.1} parent=1 // pred_check
      _
    $region7: #{tpu_custom_call.1} parent=1 // pred_check_branch
      %17 = sbr.rel (0) target = $region9
    $region8: #{tpu_custom_call.1} parent=1 // pred_region
      _
    $region9: #{tpu_custom_call.1} parent=1 // pred_fallthru
      _
    // Predicated region
    $region10: #{tpu_custom_call.1} parent=1 // pred_check
      _
    $region11: #{tpu_custom_call.1} parent=1 // pred_check_branch
      %19 = sbr.rel (0) target = $region13
    $region12: #{tpu_custom_call.1} parent=1 // pred_region
      _
    $region13: #{tpu_custom_call.1} parent=1 // pred_fallthru
      _
    // Predicated region
    $region14: #{tpu_custom_call.1} parent=1 // pred_check
      _
    $region15: #{tpu_custom_call.1} parent=1 // pred_check_branch
      %21 = sbr.rel (0) target = $region17
    $region16: #{tpu_custom_call.1} parent=1 // pred_region
      _
    $region17: #{tpu_custom_call.1} parent=1 // pred_fallthru
      _
    // Predicated region
    $region18: #{tpu_custom_call.1} parent=1 // pred_check
      _
    $region19: #{tpu_custom_call.1} parent=1 // pred_check_branch
      %23 = sbr.rel (0) target = $region21
    $region20: #{tpu_custom_call.1} parent=1 // pred_region
      _
    $region21: #{tpu_custom_call.1} parent=1 // pred_fallthru
      _
    // Predicated region
    $region22: #{tpu_custom_call.1} parent=1 // pred_check
      _
    $region23: #{tpu_custom_call.1} parent=1 // pred_check_branch
      %25 = sbr.rel (0) target = $region25
    $region24: #{tpu_custom_call.1} parent=1 // pred_region
      %s27 = ssub.s32 1024, 1024
      %28 = vsyncadd [#allocation3], %s27
      %s29 = sshll.u32 [#allocation2], 4
      %s30 = int_to_ptr.vmem [resolvable:$true] %s29
      %35 = dma.hbm_to_vmem [thread:$0]  %s5, 1024, %s30, [#allocation3], 128, 128, 8
    $region25: #{tpu_custom_call.1} parent=1 // pred_fallthru
      _
    // Predicated region
    $region26: #{tpu_custom_call.1} parent=1 // pred_check
      _
    $region27: #{tpu_custom_call.1} parent=1 // pred_check_branch
      %37 = sbr.rel (0) target = $region29
    $region28: #{tpu_custom_call.1} parent=1 // pred_region
      _
    $region29: #{tpu_custom_call.1} parent=1 // pred_fallthru
      _
    // Predicated region
    $region30: #{tpu_custom_call.1} parent=1 // pred_check
      _
    $region31: #{tpu_custom_call.1} parent=1 // pred_check_branch
      %39 = sbr.rel (0) target = $region33
    $region32: #{tpu_custom_call.1} parent=1 // pred_region
      %40 = dma.done [#allocation3], 1024
    $region33: #{tpu_custom_call.1} parent=1 // pred_fallthru
      _
    %v41 = vld [vmem:[%s1] sm:$0xff]
    %v42 = vld [vmem:[%s1 + $0x8] sm:$0xff]
    %v43 = vld [vmem:[%s1 + $0x10] sm:$0xff]
    %v44 = vld [vmem:[%s1 + $0x18] sm:$0xff]
    %v45 = vld [vmem:[%s1 + $0x20] sm:$0xff]
    %v46 = vld [vmem:[%s1 + $0x28] sm:$0xff]
    %v47 = vld [vmem:[%s1 + $0x30] sm:$0xff]
    %v48 = vld [vmem:[%s1 + $0x38] sm:$0xff]
    %v49 = vld [vmem:[%s1 + $0x40] sm:$0xff]
    %v50 = vld [vmem:[%s1 + $0x48] sm:$0xff]
    %v51 = vld [vmem:[%s1 + $0x50] sm:$0xff]
    %v52 = vld [vmem:[%s1 + $0x58] sm:$0xff]
    %v53 = vld [vmem:[%s1 + $0x60] sm:$0xff]
    %v54 = vld [vmem:[%s1 + $0x68] sm:$0xff]
    %v55 = vld [vmem:[%s1 + $0x70] sm:$0xff]
    %v56 = vld [vmem:[%s1 + $0x78] sm:$0xff]
    %v57 = vld [vmem:[%s2] sm:$0xff]
    %v58 = vld [vmem:[%s2 + $0x8] sm:$0xff]
    %v59 = vld [vmem:[%s2 + $0x10] sm:$0xff]
    %v60 = vld [vmem:[%s2 + $0x18] sm:$0xff]
    %vm61 = vcmask 261120
    %v63 = vsel %vm61, %v41, 0
    %v66 = vsel %vm61, %v42, 0
    %v69 = vsel %vm61, %v43, 0
    %v72 = vsel %vm61, %v44, 0
    %v75 = vsel %vm61, %v45, 0
    %v78 = vsel %vm61, %v46, 0
    %v81 = vsel %vm61, %v47, 0
    %v84 = vsel %vm61, %v48, 0
    %v87 = vsel %vm61, %v49, 0
    %v90 = vsel %vm61, %v50, 0
    %v93 = vsel %vm61, %v51, 0
    %v96 = vsel %vm61, %v52, 0
    %v99 = vsel %vm61, %v53, 0
    %v102 = vsel %vm61, %v54, 0
    %v105 = vsel %vm61, %v55, 0
    %v108 = vsel %vm61, %v56, 0
    %110 = vmatprep.subr.mxu0 0.0
    %111 = vmatpush1.msra.mxu0 %v57
    %112 = vmatprep.subr.mxu0 0.0
    %113 = vmatpush1.msra.mxu0 %v58
    %114 = vmatprep.subr.mxu0 0.0
    %115 = vmatpush1.msra.mxu0 %v59
    %116 = vmatprep.subr.mxu0 0.0
    %117 = vmatpush1.msra.mxu0 %v60
    %118 = vmatprep.subr.mxu0 0.0
    %119 = vmatpush1.msra.mxu0 0.0
    %120 = vmatprep.subr.mxu0 0.0
    %121 = vmatpush1.msra.mxu0 0.0
    %122 = vmatprep.subr.mxu0 0.0
    %123 = vmatpush1.msra.mxu0 0.0
    %124 = vmatprep.subr.mxu0 0.0
    %125 = vmatpush1.msra.mxu0 0.0
    %126 = vmatprep.subr.mxu0 0.0
    %127 = vmatpush1.msra.mxu0 0.0
    %128 = vmatprep.subr.mxu0 0.0
    %129 = vmatpush1.msra.mxu0 0.0
    %130 = vmatprep.subr.mxu0 0.0
    %131 = vmatpush1.msra.mxu0 0.0
    %132 = vmatprep.subr.mxu0 0.0
    %133 = vmatpush1.msra.mxu0 0.0
    %134 = vmatprep.subr.mxu0 0.0
    %135 = vmatpush1.msra.mxu0 0.0
    %136 = vmatprep.subr.mxu0 0.0
    %137 = vmatpush1.msra.mxu0 0.0
    %138 = vmatprep.subr.mxu0 0.0
    %139 = vmatpush1.msra.mxu0 0.0
    %140 = vmatprep.subr.mxu0 0.0
    %141 = vmatpush1.msra.mxu0 0.0
    %142 = vmatprep.subr.mxu0 0.0
    %143 = vmatpush1.msra.mxu0 0.0
    %144 = vmatprep.subr.mxu0 0.0
    %145 = vmatpush1.msra.mxu0 0.0
    %146 = vmatprep.subr.mxu0 0.0
    %147 = vmatpush1.msra.mxu0 0.0
    %148 = vmatprep.subr.mxu0 0.0
    %149 = vmatpush1.msra.mxu0 0.0
    %150 = vmatprep.subr.mxu0 0.0
    %151 = vmatpush1.msra.mxu0 0.0
    %152 = vmatprep.subr.mxu0 0.0
    %153 = vmatpush1.msra.mxu0 0.0
    %154 = vmatprep.subr.mxu0 0.0
    %155 = vmatpush1.msra.mxu0 0.0
    %156 = vmatprep.subr.mxu0 0.0
    %157 = vmatpush1.msra.mxu0 0.0
    %158 = vmatprep.subr.mxu0 0.0
    %159 = vmatpush1.msra.mxu0 0.0
    %160 = vmatprep.subr.mxu0 0.0
    %161 = vmatpush1.msra.mxu0 0.0
    %162 = vmatprep.subr.mxu0 0.0
    %163 = vmatpush1.msra.mxu0 0.0
    %164 = vmatprep.subr.mxu0 0.0
    %165 = vmatpush1.msra.mxu0 0.0
    %166 = vmatprep.subr.mxu0 0.0
    %167 = vmatpush1.msra.mxu0 0.0
    %168 = vmatprep.subr.mxu0 0.0
    %169 = vmatpush1.msra.mxu0 0.0
    %170 = vmatprep.subr.mxu0 0.0
    %171 = vmatpush1.msra.mxu0 0.0
    %172 = vmatprep.subr.mxu0 0.0
    %173 = vmatpush1.msra.mxu0 0.0
    %174 = vmatprep.mubr.f32.mxu0 0.0
    %175 = vmatmul.mubr.f32.gmra.mrb[0].mxu0 %v63
    %v176 = vpop.f32.mrb[0].mxu0
    %v177 = vadd.f32 0.0, %v176
    %v178 = vpop.f32.mrb[0].mxu0
    %179 = vmatprep.mubr.f32.mxu0 0.0
    %180 = vmatmul.mubr.f32.gmra.mrb[0].mxu0 %v66
    %v181 = vpop.f32.mrb[0].mxu0
    %v182 = vadd.f32 0.0, %v181
    %v183 = vpop.f32.mrb[0].mxu0
    %184 = vmatprep.mubr.f32.mxu0 0.0
    %185 = vmatmul.mubr.f32.gmra.mrb[0].mxu0 %v69
    %v186 = vpop.f32.mrb[0].mxu0
    %v187 = vadd.f32 0.0, %v186
    %v188 = vpop.f32.mrb[0].mxu0
    %189 = vmatprep.mubr.f32.mxu0 0.0
    %190 = vmatmul.mubr.f32.gmra.mrb[0].mxu0 %v72
    %v191 = vpop.f32.mrb[0].mxu0
    %v192 = vadd.f32 0.0, %v191
    %v193 = vpop.f32.mrb[0].mxu0
    %194 = vmatprep.mubr.f32.mxu0 0.0
    %195 = vmatmul.mubr.f32.gmra.mrb[0].mxu0 %v75
    %v196 = vpop.f32.mrb[0].mxu0
    %v197 = vadd.f32 0.0, %v196
    %v198 = vpop.f32.mrb[0].mxu0
    %199 = vmatprep.mubr.f32.mxu0 0.0
    %200 = vmatmul.mubr.f32.gmra.mrb[0].mxu0 %v78
    %v201 = vpop.f32.mrb[0].mxu0
    %v202 = vadd.f32 0.0, %v201
    %v203 = vpop.f32.mrb[0].mxu0
    %204 = vmatprep.mubr.f32.mxu0 0.0
    %205 = vmatmul.mubr.f32.gmra.mrb[0].mxu0 %v81
    %v206 = vpop.f32.mrb[0].mxu0
    %v207 = vadd.f32 0.0, %v206
    %v208 = vpop.f32.mrb[0].mxu0
    %209 = vmatprep.mubr.f32.mxu0 0.0
    %210 = vmatmul.mubr.f32.gmra.mrb[0].mxu0 %v84
    %v211 = vpop.f32.mrb[0].mxu0
    %v212 = vadd.f32 0.0, %v211
    %v213 = vpop.f32.mrb[0].mxu0
    %214 = vmatprep.mubr.f32.mxu0 0.0
    %215 = vmatmul.mubr.f32.gmra.mrb[0].mxu0 %v87
    %v216 = vpop.f32.mrb[0].mxu0
    %v217 = vadd.f32 0.0, %v216
    %v218 = vpop.f32.mrb[0].mxu0
    %219 = vmatprep.mubr.f32.mxu0 0.0
    %220 = vmatmul.mubr.f32.gmra.mrb[0].mxu0 %v90
    %v221 = vpop.f32.mrb[0].mxu0
    %v222 = vadd.f32 0.0, %v221
    %v223 = vpop.f32.mrb[0].mxu0
    %224 = vmatprep.mubr.f32.mxu0 0.0
    %225 = vmatmul.mubr.f32.gmra.mrb[0].mxu0 %v93
    %v226 = vpop.f32.mrb[0].mxu0
    %v227 = vadd.f32 0.0, %v226
    %v228 = vpop.f32.mrb[0].mxu0
    %229 = vmatprep.mubr.f32.mxu0 0.0
    %230 = vmatmul.mubr.f32.gmra.mrb[0].mxu0 %v96
    %v231 = vpop.f32.mrb[0].mxu0
    %v232 = vadd.f32 0.0, %v231
    %v233 = vpop.f32.mrb[0].mxu0
    %234 = vmatprep.mubr.f32.mxu0 0.0
    %235 = vmatmul.mubr.f32.gmra.mrb[0].mxu0 %v99
    %v236 = vpop.f32.mrb[0].mxu0
    %v237 = vadd.f32 0.0, %v236
    %v238 = vpop.f32.mrb[0].mxu0
    %239 = vmatprep.mubr.f32.mxu0 0.0
    %240 = vmatmul.mubr.f32.gmra.mrb[0].mxu0 %v102
    %v241 = vpop.f32.mrb[0].mxu0
    %v242 = vadd.f32 0.0, %v241
    %v243 = vpop.f32.mrb[0].mxu0
    %244 = vmatprep.mubr.f32.mxu0 0.0
    %245 = vmatmul.mubr.f32.gmra.mrb[0].mxu0 %v105
    %v246 = vpop.f32.mrb[0].mxu0
    %v247 = vadd.f32 0.0, %v246
    %v248 = vpop.f32.mrb[0].mxu0
    %249 = vmatprep.mubr.f32.mxu0 0.0
    %250 = vmatmul.mubr.f32.gmra.mrb[0].mxu0 %v108
    %v251 = vpop.f32.mrb[0].mxu0
    %v252 = vadd.f32 0.0, %v251
    %v253 = vpop.f32.mrb[0].mxu0
    %254 = vdwg.mxu0
    %v255 = vld [vmem:[%s0] sm:$0xff]
    %v256 = vld [vmem:[%s0 + $0x8] sm:$0xff]
    %v257 = vld [vmem:[%s0 + $0x10] sm:$0xff]
    %v258 = vld [vmem:[%s0 + $0x18] sm:$0xff]
    %v259 = vld [vmem:[%s0 + $0x20] sm:$0xff]
    %v260 = vld [vmem:[%s0 + $0x28] sm:$0xff]
    %v261 = vld [vmem:[%s0 + $0x30] sm:$0xff]
    %v262 = vld [vmem:[%s0 + $0x38] sm:$0xff]
    %v263 = vld [vmem:[%s0 + $0x40] sm:$0xff]
    %v264 = vld [vmem:[%s0 + $0x48] sm:$0xff]
    %v265 = vld [vmem:[%s0 + $0x50] sm:$0xff]
    %v266 = vld [vmem:[%s0 + $0x58] sm:$0xff]
    %v267 = vld [vmem:[%s0 + $0x60] sm:$0xff]
    %v268 = vld [vmem:[%s0 + $0x68] sm:$0xff]
    %v269 = vld [vmem:[%s0 + $0x70] sm:$0xff]
    %v270 = vld [vmem:[%s0 + $0x78] sm:$0xff]
    %271 = vmatprep.subr.mxu0 0.0
    %272 = vmatpush1.msra.mxu0 %v177
    %273 = vmatprep.subr.mxu0 0.0
    %274 = vmatpush1.msra.mxu0 %v182
    %275 = vmatprep.subr.mxu0 0.0
    %276 = vmatpush1.msra.mxu0 %v187
    %277 = vmatprep.subr.mxu0 0.0
    %278 = vmatpush1.msra.mxu0 %v192
    %279 = vmatprep.subr.mxu0 0.0
    %280 = vmatpush1.msra.mxu0 %v197
    %281 = vmatprep.subr.mxu0 0.0
    %282 = vmatpush1.msra.mxu0 %v202
    %283 = vmatprep.subr.mxu0 0.0
    %284 = vmatpush1.msra.mxu0 %v207
    %285 = vmatprep.subr.mxu0 0.0
    %286 = vmatpush1.msra.mxu0 %v212
    %287 = vmatprep.subr.mxu0 0.0
    %288 = vmatpush1.msra.mxu0 %v217
    %289 = vmatprep.subr.mxu0 0.0
    %290 = vmatpush1.msra.mxu0 %v222
    %291 = vmatprep.subr.mxu0 0.0
    %292 = vmatpush1.msra.mxu0 %v227
    %293 = vmatprep.subr.mxu0 0.0
    %294 = vmatpush1.msra.mxu0 %v232
    %295 = vmatprep.subr.mxu0 0.0
    %296 = vmatpush1.msra.mxu0 %v237
    %297 = vmatprep.subr.mxu0 0.0
    %298 = vmatpush1.msra.mxu0 %v242
    %299 = vmatprep.subr.mxu0 0.0
    %300 = vmatpush1.msra.mxu0 %v247
    %301 = vmatprep.subr.mxu0 0.0
    %302 = vmatpush1.msra.mxu0 %v252
    %303 = vmatprep.subr.mxu0 0.0
    %304 = vmatpush1.msra.mxu0 0.0
    %305 = vmatprep.subr.mxu0 0.0
    %306 = vmatpush1.msra.mxu0 0.0
    %307 = vmatprep.subr.mxu0 0.0
    %308 = vmatpush1.msra.mxu0 0.0
    %309 = vmatprep.subr.mxu0 0.0
    %310 = vmatpush1.msra.mxu0 0.0
    %311 = vmatprep.subr.mxu0 0.0
    %312 = vmatpush1.msra.mxu0 0.0
    %313 = vmatprep.subr.mxu0 0.0
    %314 = vmatpush1.msra.mxu0 0.0
    %315 = vmatprep.subr.mxu0 0.0
    %316 = vmatpush1.msra.mxu0 0.0
    %317 = vmatprep.subr.mxu0 0.0
    %318 = vmatpush1.msra.mxu0 0.0
    %319 = vmatprep.subr.mxu0 0.0
    %320 = vmatpush1.msra.mxu0 0.0
    %321 = vmatprep.subr.mxu0 0.0
    %322 = vmatpush1.msra.mxu0 0.0
    %323 = vmatprep.subr.mxu0 0.0
    %324 = vmatpush1.msra.mxu0 0.0
    %325 = vmatprep.subr.mxu0 0.0
    %326 = vmatpush1.msra.mxu0 0.0
    %327 = vmatprep.subr.mxu0 0.0
    %328 = vmatpush1.msra.mxu0 0.0
    %329 = vmatprep.subr.mxu0 0.0
    %330 = vmatpush1.msra.mxu0 0.0
    %331 = vmatprep.subr.mxu0 0.0
    %332 = vmatpush1.msra.mxu0 0.0
    %333 = vmatprep.subr.mxu0 0.0
    %334 = vmatpush1.msra.mxu0 0.0
    %335 = vmatprep.mubr.f32.mxu0 0.0
    %336 = vmatmul.mubr.f32.gmra.mrb[0].mxu0 %v255
    %v337 = vpop.f32.mrb[0].mxu0
    %v338 = vadd.f32 0.0, %v337
    %v339 = vpop.f32.mrb[0].mxu0
    %340 = vmatprep.mubr.f32.mxu0 0.0
    %341 = vmatmul.mubr.f32.gmra.mrb[0].mxu0 %v256
    %v342 = vpop.f32.mrb[0].mxu0
    %v343 = vadd.f32 0.0, %v342
    %v344 = vpop.f32.mrb[0].mxu0
    %345 = vmatprep.mubr.f32.mxu0 0.0
    %346 = vmatmul.mubr.f32.gmra.mrb[0].mxu0 %v257
    %v347 = vpop.f32.mrb[0].mxu0
    %v348 = vadd.f32 0.0, %v347
    %v349 = vpop.f32.mrb[0].mxu0
    %350 = vmatprep.mubr.f32.mxu0 0.0
    %351 = vmatmul.mubr.f32.gmra.mrb[0].mxu0 %v258
    %v352 = vpop.f32.mrb[0].mxu0
    %v353 = vadd.f32 0.0, %v352
    %v354 = vpop.f32.mrb[0].mxu0
    %355 = vmatprep.mubr.f32.mxu0 0.0
    %356 = vmatmul.mubr.f32.gmra.mrb[0].mxu0 %v259
    %v357 = vpop.f32.mrb[0].mxu0
    %v358 = vadd.f32 0.0, %v357
    %v359 = vpop.f32.mrb[0].mxu0
    %360 = vmatprep.mubr.f32.mxu0 0.0
    %361 = vmatmul.mubr.f32.gmra.mrb[0].mxu0 %v260
    %v362 = vpop.f32.mrb[0].mxu0
    %v363 = vadd.f32 0.0, %v362
    %v364 = vpop.f32.mrb[0].mxu0
    %365 = vmatprep.mubr.f32.mxu0 0.0
    %366 = vmatmul.mubr.f32.gmra.mrb[0].mxu0 %v261
    %v367 = vpop.f32.mrb[0].mxu0
    %v368 = vadd.f32 0.0, %v367
    %v369 = vpop.f32.mrb[0].mxu0
    %370 = vmatprep.mubr.f32.mxu0 0.0
    %371 = vmatmul.mubr.f32.gmra.mrb[0].mxu0 %v262
    %v372 = vpop.f32.mrb[0].mxu0
    %v373 = vadd.f32 0.0, %v372
    %v374 = vpop.f32.mrb[0].mxu0
    %375 = vmatprep.mubr.f32.mxu0 0.0
    %376 = vmatmul.mubr.f32.gmra.mrb[0].mxu0 %v263
    %v377 = vpop.f32.mrb[0].mxu0
    %v378 = vadd.f32 0.0, %v377
    %v379 = vpop.f32.mrb[0].mxu0
    %380 = vmatprep.mubr.f32.mxu0 0.0
    %381 = vmatmul.mubr.f32.gmra.mrb[0].mxu0 %v264
    %v382 = vpop.f32.mrb[0].mxu0
    %v383 = vadd.f32 0.0, %v382
    %v384 = vpop.f32.mrb[0].mxu0
    %385 = vmatprep.mubr.f32.mxu0 0.0
    %386 = vmatmul.mubr.f32.gmra.mrb[0].mxu0 %v265
    %v387 = vpop.f32.mrb[0].mxu0
    %v388 = vadd.f32 0.0, %v387
    %v389 = vpop.f32.mrb[0].mxu0
    %390 = vmatprep.mubr.f32.mxu0 0.0
    %391 = vmatmul.mubr.f32.gmra.mrb[0].mxu0 %v266
    %v392 = vpop.f32.mrb[0].mxu0
    %v393 = vadd.f32 0.0, %v392
    %v394 = vpop.f32.mrb[0].mxu0
    %395 = vmatprep.mubr.f32.mxu0 0.0
    %396 = vmatmul.mubr.f32.gmra.mrb[0].mxu0 %v267
    %v397 = vpop.f32.mrb[0].mxu0
    %v398 = vadd.f32 0.0, %v397
    %v399 = vpop.f32.mrb[0].mxu0
    %400 = vmatprep.mubr.f32.mxu0 0.0
    %401 = vmatmul.mubr.f32.gmra.mrb[0].mxu0 %v268
    %v402 = vpop.f32.mrb[0].mxu0
    %v403 = vadd.f32 0.0, %v402
    %v404 = vpop.f32.mrb[0].mxu0
    %405 = vmatprep.mubr.f32.mxu0 0.0
    %406 = vmatmul.mubr.f32.gmra.mrb[0].mxu0 %v269
    %v407 = vpop.f32.mrb[0].mxu0
    %v408 = vadd.f32 0.0, %v407
    %v409 = vpop.f32.mrb[0].mxu0
    %410 = vmatprep.mubr.f32.mxu0 0.0
    %411 = vmatmul.mubr.f32.gmra.mrb[0].mxu0 %v270
    %v412 = vpop.f32.mrb[0].mxu0
    %v413 = vadd.f32 0.0, %v412
    %v414 = vpop.f32.mrb[0].mxu0
    %415 = vdwg.mxu0
    %v416 = vld [vmem:[%s3] sm:$0x1]
    %v418 = vlaneseq
    %v419 = vshrl.u32 %v418, 7
    %v420 = vsub.s32 0, %v419
    %v421 = vrot.slane %v416, %v420
    %v423 = vmul.f32 %v338, %v421
    %v424 = vmul.f32 %v343, %v421
    %v425 = vmul.f32 %v348, %v421
    %v426 = vmul.f32 %v353, %v421
    %v427 = vmul.f32 %v358, %v421
    %v428 = vmul.f32 %v363, %v421
    %v429 = vmul.f32 %v368, %v421
    %v430 = vmul.f32 %v373, %v421
    %v431 = vmul.f32 %v378, %v421
    %v432 = vmul.f32 %v383, %v421
    %v433 = vmul.f32 %v388, %v421
    %v434 = vmul.f32 %v393, %v421
    %v435 = vmul.f32 %v398, %v421
    %v436 = vmul.f32 %v403, %v421
    %v437 = vmul.f32 %v408, %v421
    %v438 = vmul.f32 %v413, %v421
    %v439 = vld [vmem:[%s4] sm:$0x1]
    %v441 = vlaneseq
    %v442 = vshrl.u32 %v441, 7
    %v443 = vsub.s32 0, %v442
    %v444 = vrot.slane %v439, %v443
    %v446 = vadd.f32 %v423, %v444
    %v447 = vadd.f32 %v424, %v444
    %v448 = vadd.f32 %v425, %v444
    %v449 = vadd.f32 %v426, %v444
    %v450 = vadd.f32 %v427, %v444
    %v451 = vadd.f32 %v428, %v444
    %v452 = vadd.f32 %v429, %v444
    %v453 = vadd.f32 %v430, %v444
    %v454 = vadd.f32 %v431, %v444
    %v455 = vadd.f32 %v432, %v444
    %v456 = vadd.f32 %v433, %v444
    %v457 = vadd.f32 %v434, %v444
    %v458 = vadd.f32 %v435, %v444
    %v459 = vadd.f32 %v436, %v444
    %v460 = vadd.f32 %v437, %v444
    %v461 = vadd.f32 %v438, %v444
    %v462 = vmax.f32 %v446, 0.0
    %v463 = vmax.f32 %v447, 0.0
    %v464 = vmax.f32 %v448, 0.0
    %v465 = vmax.f32 %v449, 0.0
    %v466 = vmax.f32 %v450, 0.0
    %v467 = vmax.f32 %v451, 0.0
    %v468 = vmax.f32 %v452, 0.0
    %v469 = vmax.f32 %v453, 0.0
    %v470 = vmax.f32 %v454, 0.0
    %v471 = vmax.f32 %v455, 0.0
    %v472 = vmax.f32 %v456, 0.0
    %v473 = vmax.f32 %v457, 0.0
    %v474 = vmax.f32 %v458, 0.0
    %v475 = vmax.f32 %v459, 0.0
    %v476 = vmax.f32 %v460, 0.0
    %v477 = vmax.f32 %v461, 0.0
    %v478 = vld [vmem:[#allocation2] sm:$0xff]
    %v479 = vld [vmem:[#allocation2 + $0x8] sm:$0xff]
    %v480 = vld [vmem:[#allocation2 + $0x10] sm:$0xff]
    %v481 = vld [vmem:[#allocation2 + $0x18] sm:$0xff]
    %v482 = vld [vmem:[#allocation2 + $0x20] sm:$0xff]
    %v483 = vld [vmem:[#allocation2 + $0x28] sm:$0xff]
    %v484 = vld [vmem:[#allocation2 + $0x30] sm:$0xff]
    %v485 = vld [vmem:[#allocation2 + $0x38] sm:$0xff]
    %vm486 = vcmask 523264
    %v488 = vsel %vm486, %v462, 0
    %v491 = vsel %vm486, %v463, 0
    %v494 = vsel %vm486, %v464, 0
    %v497 = vsel %vm486, %v465, 0
    %v500 = vsel %vm486, %v466, 0
    %v503 = vsel %vm486, %v467, 0
    %v506 = vsel %vm486, %v468, 0
    %v509 = vsel %vm486, %v469, 0
    %v512 = vsel %vm486, %v470, 0
    %v515 = vsel %vm486, %v471, 0
    %v518 = vsel %vm486, %v472, 0
    %v521 = vsel %vm486, %v473, 0
    %v524 = vsel %vm486, %v474, 0
    %v527 = vsel %vm486, %v475, 0
    %v530 = vsel %vm486, %v476, 0
    %v533 = vsel %vm486, %v477, 0
    %535 = vmatprep.subr.mxu0 0.0
    %536 = vmatpush1.msra.mxu0 %v478
    %537 = vmatprep.subr.mxu0 0.0
    %538 = vmatpush1.msra.mxu0 %v479
    %539 = vmatprep.subr.mxu0 0.0
    %540 = vmatpush1.msra.mxu0 %v480
    %541 = vmatprep.subr.mxu0 0.0
    %542 = vmatpush1.msra.mxu0 %v481
    %543 = vmatprep.subr.mxu0 0.0
    %544 = vmatpush1.msra.mxu0 %v482
    %545 = vmatprep.subr.mxu0 0.0
    %546 = vmatpush1.msra.mxu0 %v483
    %547 = vmatprep.subr.mxu0 0.0
    %548 = vmatpush1.msra.mxu0 %v484
    %549 = vmatprep.subr.mxu0 0.0
    %550 = vmatpush1.msra.mxu0 %v485
    %551 = vmatprep.subr.mxu0 0.0
    %552 = vmatpush1.msra.mxu0 0.0
    %553 = vmatprep.subr.mxu0 0.0
    %554 = vmatpush1.msra.mxu0 0.0
    %555 = vmatprep.subr.mxu0 0.0
    %556 = vmatpush1.msra.mxu0 0.0
    %557 = vmatprep.subr.mxu0 0.0
    %558 = vmatpush1.msra.mxu0 0.0
    %559 = vmatprep.subr.mxu0 0.0
    %560 = vmatpush1.msra.mxu0 0.0
    %561 = vmatprep.subr.mxu0 0.0
    %562 = vmatpush1.msra.mxu0 0.0
    %563 = vmatprep.subr.mxu0 0.0
    %564 = vmatpush1.msra.mxu0 0.0
    %565 = vmatprep.subr.mxu0 0.0
    %566 = vmatpush1.msra.mxu0 0.0
    %567 = vmatprep.subr.mxu0 0.0
    %568 = vmatpush1.msra.mxu0 0.0
    %569 = vmatprep.subr.mxu0 0.0
    %570 = vmatpush1.msra.mxu0 0.0
    %571 = vmatprep.subr.mxu0 0.0
    %572 = vmatpush1.msra.mxu0 0.0
    %573 = vmatprep.subr.mxu0 0.0
    %574 = vmatpush1.msra.mxu0 0.0
    %575 = vmatprep.subr.mxu0 0.0
    %576 = vmatpush1.msra.mxu0 0.0
    %577 = vmatprep.subr.mxu0 0.0
    %578 = vmatpush1.msra.mxu0 0.0
    %579 = vmatprep.subr.mxu0 0.0
    %580 = vmatpush1.msra.mxu0 0.0
    %581 = vmatprep.subr.mxu0 0.0
    %582 = vmatpush1.msra.mxu0 0.0
    %583 = vmatprep.subr.mxu0 0.0
    %584 = vmatpush1.msra.mxu0 0.0
    %585 = vmatprep.subr.mxu0 0.0
    %586 = vmatpush1.msra.mxu0 0.0
    %587 = vmatprep.subr.mxu0 0.0
    %588 = vmatpush1.msra.mxu0 0.0
    %589 = vmatprep.subr.mxu0 0.0
    %590 = vmatpush1.msra.mxu0 0.0
    %591 = vmatprep.subr.mxu0 0.0
    %592 = vmatpush1.msra.mxu0 0.0
    %593 = vmatprep.subr.mxu0 0.0
    %594 = vmatpush1.msra.mxu0 0.0
    %595 = vmatprep.subr.mxu0 0.0
    %596 = vmatpush1.msra.mxu0 0.0
    %597 = vmatprep.subr.mxu0 0.0
    %598 = vmatpush1.msra.mxu0 0.0
    %599 = vmatprep.mubr.f32.mxu0 0.0
    %600 = vmatmul.mubr.f32.gmra.mrb[0].mxu0 %v488
    %v601 = vpop.f32.mrb[0].mxu0
    %v602 = vadd.f32 0.0, %v601
    %v603 = vpop.f32.mrb[0].mxu0
    %604 = vmatprep.mubr.f32.mxu0 0.0
    %605 = vmatmul.mubr.f32.gmra.mrb[0].mxu0 %v491
    %v606 = vpop.f32.mrb[0].mxu0
    %v607 = vadd.f32 0.0, %v606
    %v608 = vpop.f32.mrb[0].mxu0
    %609 = vmatprep.mubr.f32.mxu0 0.0
    %610 = vmatmul.mubr.f32.gmra.mrb[0].mxu0 %v494
    %v611 = vpop.f32.mrb[0].mxu0
    %v612 = vadd.f32 0.0, %v611
    %v613 = vpop.f32.mrb[0].mxu0
    %614 = vmatprep.mubr.f32.mxu0 0.0
    %615 = vmatmul.mubr.f32.gmra.mrb[0].mxu0 %v497
    %v616 = vpop.f32.mrb[0].mxu0
    %v617 = vadd.f32 0.0, %v616
    %v618 = vpop.f32.mrb[0].mxu0
    %619 = vmatprep.mubr.f32.mxu0 0.0
    %620 = vmatmul.mubr.f32.gmra.mrb[0].mxu0 %v500
    %v621 = vpop.f32.mrb[0].mxu0
    %v622 = vadd.f32 0.0, %v621
    %v623 = vpop.f32.mrb[0].mxu0
    %624 = vmatprep.mubr.f32.mxu0 0.0
    %625 = vmatmul.mubr.f32.gmra.mrb[0].mxu0 %v503
    %v626 = vpop.f32.mrb[0].mxu0
    %v627 = vadd.f32 0.0, %v626
    %v628 = vpop.f32.mrb[0].mxu0
    %629 = vmatprep.mubr.f32.mxu0 0.0
    %630 = vmatmul.mubr.f32.gmra.mrb[0].mxu0 %v506
    %v631 = vpop.f32.mrb[0].mxu0
    %v632 = vadd.f32 0.0, %v631
    %v633 = vpop.f32.mrb[0].mxu0
    %634 = vmatprep.mubr.f32.mxu0 0.0
    %635 = vmatmul.mubr.f32.gmra.mrb[0].mxu0 %v509
    %v636 = vpop.f32.mrb[0].mxu0
    %v637 = vadd.f32 0.0, %v636
    %v638 = vpop.f32.mrb[0].mxu0
    %639 = vmatprep.mubr.f32.mxu0 0.0
    %640 = vmatmul.mubr.f32.gmra.mrb[0].mxu0 %v512
    %v641 = vpop.f32.mrb[0].mxu0
    %v642 = vadd.f32 0.0, %v641
    %v643 = vpop.f32.mrb[0].mxu0
    %644 = vmatprep.mubr.f32.mxu0 0.0
    %645 = vmatmul.mubr.f32.gmra.mrb[0].mxu0 %v515
    %v646 = vpop.f32.mrb[0].mxu0
    %v647 = vadd.f32 0.0, %v646
    %v648 = vpop.f32.mrb[0].mxu0
    %649 = vmatprep.mubr.f32.mxu0 0.0
    %650 = vmatmul.mubr.f32.gmra.mrb[0].mxu0 %v518
    %v651 = vpop.f32.mrb[0].mxu0
    %v652 = vadd.f32 0.0, %v651
    %v653 = vpop.f32.mrb[0].mxu0
    %654 = vmatprep.mubr.f32.mxu0 0.0
    %655 = vmatmul.mubr.f32.gmra.mrb[0].mxu0 %v521
    %v656 = vpop.f32.mrb[0].mxu0
    %v657 = vadd.f32 0.0, %v656
    %v658 = vpop.f32.mrb[0].mxu0
    %659 = vmatprep.mubr.f32.mxu0 0.0
    %660 = vmatmul.mubr.f32.gmra.mrb[0].mxu0 %v524
    %v661 = vpop.f32.mrb[0].mxu0
    %v662 = vadd.f32 0.0, %v661
    %v663 = vpop.f32.mrb[0].mxu0
    %664 = vmatprep.mubr.f32.mxu0 0.0
    %665 = vmatmul.mubr.f32.gmra.mrb[0].mxu0 %v527
    %v666 = vpop.f32.mrb[0].mxu0
    %v667 = vadd.f32 0.0, %v666
    %v668 = vpop.f32.mrb[0].mxu0
    %669 = vmatprep.mubr.f32.mxu0 0.0
    %670 = vmatmul.mubr.f32.gmra.mrb[0].mxu0 %v530
    %v671 = vpop.f32.mrb[0].mxu0
    %v672 = vadd.f32 0.0, %v671
    %v673 = vpop.f32.mrb[0].mxu0
    %674 = vmatprep.mubr.f32.mxu0 0.0
    %675 = vmatmul.mubr.f32.gmra.mrb[0].mxu0 %v533
    %v676 = vpop.f32.mrb[0].mxu0
    %v677 = vadd.f32 0.0, %v676
    %v678 = vpop.f32.mrb[0].mxu0
    %679 = vdwg.mxu0
    %v680 = vld [vmem:[%s6] sm:$0x1]
    %v682 = vlaneseq
    %v683 = vshrl.u32 %v682, 7
    %v684 = vsub.s32 0, %v683
    %v685 = vrot.slane %v680, %v684
    %687 = vmatprep.subr.mxu0 0.0
    %688 = vmatpush1.msra.mxu0 %v602
    %689 = vmatprep.subr.mxu0 0.0
    %690 = vmatpush1.msra.mxu0 %v607
    %691 = vmatprep.subr.mxu0 0.0
    %692 = vmatpush1.msra.mxu0 %v612
    %693 = vmatprep.subr.mxu0 0.0
    %694 = vmatpush1.msra.mxu0 %v617
    %695 = vmatprep.subr.mxu0 0.0
    %696 = vmatpush1.msra.mxu0 %v622
    %697 = vmatprep.subr.mxu0 0.0
    %698 = vmatpush1.msra.mxu0 %v627
    %699 = vmatprep.subr.mxu0 0.0
    %700 = vmatpush1.msra.mxu0 %v632
    %701 = vmatprep.subr.mxu0 0.0
    %702 = vmatpush1.msra.mxu0 %v637
    %703 = vmatprep.subr.mxu0 0.0
    %704 = vmatpush1.msra.mxu0 %v642
    %705 = vmatprep.subr.mxu0 0.0
    %706 = vmatpush1.msra.mxu0 %v647
    %707 = vmatprep.subr.mxu0 0.0
    %708 = vmatpush1.msra.mxu0 %v652
    %709 = vmatprep.subr.mxu0 0.0
    %710 = vmatpush1.msra.mxu0 %v657
    %711 = vmatprep.subr.mxu0 0.0
    %712 = vmatpush1.msra.mxu0 %v662
    %713 = vmatprep.subr.mxu0 0.0
    %714 = vmatpush1.msra.mxu0 %v667
    %715 = vmatprep.subr.mxu0 0.0
    %716 = vmatpush1.msra.mxu0 %v672
    %717 = vmatprep.subr.mxu0 0.0
    %718 = vmatpush1.msra.mxu0 %v677
    %719 = vmatprep.subr.mxu0 0.0
    %720 = vmatpush1.msra.mxu0 0.0
    %721 = vmatprep.subr.mxu0 0.0
    %722 = vmatpush1.msra.mxu0 0.0
    %723 = vmatprep.subr.mxu0 0.0
    %724 = vmatpush1.msra.mxu0 0.0
    %725 = vmatprep.subr.mxu0 0.0
    %726 = vmatpush1.msra.mxu0 0.0
    %727 = vmatprep.subr.mxu0 0.0
    %728 = vmatpush1.msra.mxu0 0.0
    %729 = vmatprep.subr.mxu0 0.0
    %730 = vmatpush1.msra.mxu0 0.0
    %731 = vmatprep.subr.mxu0 0.0
    %732 = vmatpush1.msra.mxu0 0.0
    %733 = vmatprep.subr.mxu0 0.0
    %734 = vmatpush1.msra.mxu0 0.0
    %735 = vmatprep.subr.mxu0 0.0
    %736 = vmatpush1.msra.mxu0 0.0
    %737 = vmatprep.subr.mxu0 0.0
    %738 = vmatpush1.msra.mxu0 0.0
    %739 = vmatprep.subr.mxu0 0.0
    %740 = vmatpush1.msra.mxu0 0.0
    %741 = vmatprep.subr.mxu0 0.0
    %742 = vmatpush1.msra.mxu0 0.0
    %743 = vmatprep.subr.mxu0 0.0
    %744 = vmatpush1.msra.mxu0 0.0
    %745 = vmatprep.subr.mxu0 0.0
    %746 = vmatpush1.msra.mxu0 0.0
    %747 = vmatprep.subr.mxu0 0.0
    %748 = vmatpush1.msra.mxu0 0.0
    %749 = vmatprep.subr.mxu0 0.0
    %750 = vmatpush1.msra.mxu0 0.0
    %751 = vmatprep.mubr.f32.mxu0 0.0
    %752 = vmatmul.mubr.f32.gmra.mrb[0].mxu0 %v255
    %v753 = vpop.f32.mrb[0].mxu0
    %v754 = vadd.f32 %v685, %v753
    %v755 = vpop.f32.mrb[0].mxu0
    %756 = vmatprep.mubr.f32.mxu0 0.0
    %757 = vmatmul.mubr.f32.gmra.mrb[0].mxu0 %v256
    %v758 = vpop.f32.mrb[0].mxu0
    %v759 = vadd.f32 %v685, %v758
    %v760 = vpop.f32.mrb[0].mxu0
    %761 = vmatprep.mubr.f32.mxu0 0.0
    %762 = vmatmul.mubr.f32.gmra.mrb[0].mxu0 %v257
    %v763 = vpop.f32.mrb[0].mxu0
    %v764 = vadd.f32 %v685, %v763
    %v765 = vpop.f32.mrb[0].mxu0
    %766 = vmatprep.mubr.f32.mxu0 0.0
    %767 = vmatmul.mubr.f32.gmra.mrb[0].mxu0 %v258
    %v768 = vpop.f32.mrb[0].mxu0
    %v769 = vadd.f32 %v685, %v768
    %v770 = vpop.f32.mrb[0].mxu0
    %771 = vmatprep.mubr.f32.mxu0 0.0
    %772 = vmatmul.mubr.f32.gmra.mrb[0].mxu0 %v259
    %v773 = vpop.f32.mrb[0].mxu0
    %v774 = vadd.f32 %v685, %v773
    %v775 = vpop.f32.mrb[0].mxu0
    %776 = vmatprep.mubr.f32.mxu0 0.0
    %777 = vmatmul.mubr.f32.gmra.mrb[0].mxu0 %v260
    %v778 = vpop.f32.mrb[0].mxu0
    %v779 = vadd.f32 %v685, %v778
    %v780 = vpop.f32.mrb[0].mxu0
    %781 = vmatprep.mubr.f32.mxu0 0.0
    %782 = vmatmul.mubr.f32.gmra.mrb[0].mxu0 %v261
    %v783 = vpop.f32.mrb[0].mxu0
    %v784 = vadd.f32 %v685, %v783
    %v785 = vpop.f32.mrb[0].mxu0
    %786 = vmatprep.mubr.f32.mxu0 0.0
    %787 = vmatmul.mubr.f32.gmra.mrb[0].mxu0 %v262
    %v788 = vpop.f32.mrb[0].mxu0
    %v789 = vadd.f32 %v685, %v788
    %v790 = vpop.f32.mrb[0].mxu0
    %791 = vmatprep.mubr.f32.mxu0 0.0
    %792 = vmatmul.mubr.f32.gmra.mrb[0].mxu0 %v263
    %v793 = vpop.f32.mrb[0].mxu0
    %v794 = vadd.f32 %v685, %v793
    %v795 = vpop.f32.mrb[0].mxu0
    %796 = vmatprep.mubr.f32.mxu0 0.0
    %797 = vmatmul.mubr.f32.gmra.mrb[0].mxu0 %v264
    %v798 = vpop.f32.mrb[0].mxu0
    %v799 = vadd.f32 %v685, %v798
    %v800 = vpop.f32.mrb[0].mxu0
    %801 = vmatprep.mubr.f32.mxu0 0.0
    %802 = vmatmul.mubr.f32.gmra.mrb[0].mxu0 %v265
    %v803 = vpop.f32.mrb[0].mxu0
    %v804 = vadd.f32 %v685, %v803
    %v805 = vpop.f32.mrb[0].mxu0
    %806 = vmatprep.mubr.f32.mxu0 0.0
    %807 = vmatmul.mubr.f32.gmra.mrb[0].mxu0 %v266
    %v808 = vpop.f32.mrb[0].mxu0
    %v809 = vadd.f32 %v685, %v808
    %v810 = vpop.f32.mrb[0].mxu0
    %811 = vmatprep.mubr.f32.mxu0 0.0
    %812 = vmatmul.mubr.f32.gmra.mrb[0].mxu0 %v267
    %v813 = vpop.f32.mrb[0].mxu0
    %v814 = vadd.f32 %v685, %v813
    %v815 = vpop.f32.mrb[0].mxu0
    %816 = vmatprep.mubr.f32.mxu0 0.0
    %817 = vmatmul.mubr.f32.gmra.mrb[0].mxu0 %v268
    %v818 = vpop.f32.mrb[0].mxu0
    %v819 = vadd.f32 %v685, %v818
    %v820 = vpop.f32.mrb[0].mxu0
    %821 = vmatprep.mubr.f32.mxu0 0.0
    %822 = vmatmul.mubr.f32.gmra.mrb[0].mxu0 %v269
    %v823 = vpop.f32.mrb[0].mxu0
    %v824 = vadd.f32 %v685, %v823
    %v825 = vpop.f32.mrb[0].mxu0
    %826 = vmatprep.mubr.f32.mxu0 0.0
    %827 = vmatmul.mubr.f32.gmra.mrb[0].mxu0 %v270
    %v828 = vpop.f32.mrb[0].mxu0
    %v829 = vadd.f32 %v685, %v828
    %v830 = vpop.f32.mrb[0].mxu0
    %831 = vdwg.mxu0
    %832 = vst [vmem:[#allocation5] sm:$0xff] %v754
    %833 = vst [vmem:[#allocation5 + $0x8] sm:$0xff] %v759
    %834 = vst [vmem:[#allocation5 + $0x10] sm:$0xff] %v764
    %835 = vst [vmem:[#allocation5 + $0x18] sm:$0xff] %v769
    %836 = vst [vmem:[#allocation5 + $0x20] sm:$0xff] %v774
    %837 = vst [vmem:[#allocation5 + $0x28] sm:$0xff] %v779
    %838 = vst [vmem:[#allocation5 + $0x30] sm:$0xff] %v784
    %839 = vst [vmem:[#allocation5 + $0x38] sm:$0xff] %v789
    %840 = vst [vmem:[#allocation5 + $0x40] sm:$0xff] %v794
    %841 = vst [vmem:[#allocation5 + $0x48] sm:$0xff] %v799
    %842 = vst [vmem:[#allocation5 + $0x50] sm:$0xff] %v804
    %843 = vst [vmem:[#allocation5 + $0x58] sm:$0xff] %v809
    %844 = vst [vmem:[#allocation5 + $0x60] sm:$0xff] %v814
    %845 = vst [vmem:[#allocation5 + $0x68] sm:$0xff] %v819
    %846 = vst [vmem:[#allocation5 + $0x70] sm:$0xff] %v824
    %847 = vst [vmem:[#allocation5 + $0x78] sm:$0xff] %v829
    // Predicated region
    $region34: #{tpu_custom_call.1} parent=1 // pred_check
      _
    $region35: #{tpu_custom_call.1} parent=1 // pred_check_branch
      %849 = sbr.rel (0) target = $region37
    $region36: #{tpu_custom_call.1} parent=1 // pred_region
      %s851 = ssub.s32 2048, 2048
      %852 = vsyncadd [#allocation4], %s851
      %s853 = sshll.u32 [#allocation5], 4
      %s854 = int_to_ptr.vmem [resolvable:$true] %s853
      %859 = dma.vmem_to_hbm [thread:$0]  %s854, 2048, %s7, [#allocation4], 128, 128, 8
    $region37: #{tpu_custom_call.1} parent=1 // pred_fallthru
      _
    // Predicated region
    $region38: #{tpu_custom_call.1} parent=1 // pred_check
      _
    $region39: #{tpu_custom_call.1} parent=1 // pred_check_branch
      %861 = sbr.rel (0) target = $region41
    $region40: #{tpu_custom_call.1} parent=1 // pred_region
      %862 = dma.done [#allocation4], 2048
    $region41: #{tpu_custom_call.1} parent=1 // pred_fallthru
      _
    %863 = vsyncpa [#allocation3], 1
    %864 = vsyncpa [#allocation4], 1

</llo_original>
